<compile_context>
chip_gen: v7x
topology: tpu7x:2x2x1
jax: 0.10.0
libtpu: 0.0.40
codegen_flags: <defaults>
</compile_context>

<pallas_src>
import functools
import math

import jax
import jax.numpy as jnp
from jax.experimental import pallas as pl
from jax.experimental.pallas import tpu as pltpu

_MIB = 1 << 20


# ----------------------------- kernels --------------------------------------


def _normalize_rows_kernel(x_ref, o_ref):
    # F.normalize(dim=1): v / max(||v||_2, 1e-12) == v * rsqrt(max(||v||^2, 1e-24))
    x = x_ref[...].astype(jnp.float32)
    inv = jax.lax.rsqrt(jnp.maximum(jnp.sum(x * x, axis=1, keepdims=True), 1e-24))
    o_ref[...] = (x * inv).astype(o_ref.dtype)


def _normalized_w_tile(w_ref, matmul_dtype):
    # Normalize the streamed (tc, F) W tile rows in exact f32.
    # TODO(synk): the review suggests scaling the (B, tc) logits *columns*
    # after the matmul instead; that needs a sublane->lane relayout of the
    # reduced norm vector (or an MXU ones-matmul that loses exact-f32 norms),
    # so the proven pre-matmul form is kept: its VPU work is hidden under the
    # HBM-bound W DMA and its temps are budgeted in vmem_limit_bytes.
    w = w_ref[...].astype(jnp.float32)
    inv = jax.lax.rsqrt(jnp.maximum(jnp.sum(w * w, axis=1, keepdims=True), 1e-24))
    return (w * inv).astype(matmul_dtype)


def _logits_tile_kernel(xn_ref, w_ref, logits_ref, *, matmul_dtype):
    wn = _normalized_w_tile(w_ref, matmul_dtype)
    logits_ref[...] = jax.lax.dot_general(
        xn_ref[...], wn,
        dimension_numbers=(((1,), (1,)), ((), ())),
        preferred_element_type=jnp.float32)


def _logits_stats_tile_kernel(s_ref, lab_ref, xn_ref, w_ref, logits_ref,
                              bavg_ref, *, matmul_dtype, tile_c):
    wn = _normalized_w_tile(w_ref, matmul_dtype)
    logits = jax.lax.dot_general(
        xn_ref[...], wn,
        dimension_numbers=(((1,), (1,)), ((), ())),
        preferred_element_type=jnp.float32)
    logits_ref[...] = logits

    # Per-tile partial of sum_{c != label} exp(s * cos) -- matches the PyTorch
    # one_hot<1 masking exactly, so the glue never subtracts two large sums.
    # Padded classes (zero W rows -> logits exactly 0) each contribute
    # exp(0) = 1 and are removed with a scalar correction in the glue.
    # Note (v5e/v6e): exp is B*tc EUP ops per step; it stays hidden under the
    # W DMA / MXU unless F is very small relative to B.
    s = s_ref[0, 0]
    cols = (jax.lax.broadcasted_iota(jnp.int32, logits.shape, 1)
            + pl.program_id(0) * tile_c)
    not_target = cols != lab_ref[...]
    terms = jnp.where(not_target, jnp.exp(s * logits), 0.0)
    bavg_ref[...] = jnp.broadcast_to(jnp.sum(terms), bavg_ref.shape)


def _scale_tile_kernel(s_ref, logits_ref, out_ref):
    out_ref[...] = s_ref[0, 0] * logits_ref[...]


# ----------------------------- tiling helpers --------------------------------


def _round_down_128(n):
    return max(128, (n // 128) * 128)


def _round_up_128(n):
    return max(128, -(-n // 128) * 128)


def _choose_class_tile(num_classes, num_features, w_itemsize, target_tile_bytes):
    """Class-tile width for streaming W.

    Targets ~target_tile_bytes of streamed W per grid step (so double-buffered
    DMAs are large vs the ~0.35 us fixed per-step overhead but still fit scoped
    VMEM on every generation, incl. v7x's 64 MiB), balances that overhead
    against padded-HBM-traffic waste, and forces >= 2 lane-aligned tiles for
    C > 256 so both v7x TensorCores share the W stream.
    """
    if num_classes <= 256:
        return num_classes          # too small to split into 128-lane tiles
    cap = _round_down_128(target_tile_bytes // max(1, num_features * w_itemsize))
    max_tc = min(cap, _round_up_128(-(-num_classes // 2)))
    hbm_bw, step_overhead = 1.3e12, 0.35e-6      # mid-generation roofline
    best_tc, best_cost = 128, None
    for tc in range(128, max_tc + 1, 128):
        c_pad = -(-num_classes // tc) * tc
        tile_bytes = tc * num_features * w_itemsize
        cost = c_pad * num_features * w_itemsize * (
            1.0 + step_overhead * hbm_bw / tile_bytes)
        if best_cost is None or cost < best_cost:
            best_tc, best_cost = tc, cost
    return best_tc


def _choose_batch_tile(batch):
    for tb in (1024, 512, 256, 128, 64, 32, 16, 8):
        if batch % tb == 0:
            return tb
    return batch


def _choose_scale_tile(batch, c_pad, tc, budget_bytes=8 * _MIB):
    # Largest lane-dense block (a multiple of the matmul tile, dividing C_pad)
    # whose double-buffered in+out footprint stays under ~budget_bytes.
    num_tiles = c_pad // tc
    best = tc
    for k in range(1, num_tiles + 1):
        if num_tiles % k == 0 and 4 * batch * (k * tc) * 4 <= budget_bytes:
            best = max(best, k * tc)
    return best


def _vmem_limit(est_bytes):
    # v5e's scoped-VMEM default is only 16 MiB (v6e/v7x: 32 MiB), so always set
    # an explicit limit; cap at 48 MiB to leave headroom on v7x (64 MiB phys).
    return int(min(48 * _MIB, max(32 * _MIB, int(est_bytes * 1.5))))


# ----------------------------- wrapper ---------------------------------------


def adacos_forward(x, W, s_init, label=None, *, matmul_dtype=jnp.bfloat16,
                   class_tile=None, class_tile_bytes=4 * _MIB):
    """Mirrors AdaCos.forward. Returns (output, s_new).

    x: (B, F) activations; W: (C, F) weights.  Pass W as bf16 (persistent
    shadow) to halve the dominant HBM stream; row norms are computed in f32.
    """
    B, F = x.shape
    C = W.shape[0]
    w_itemsize = jnp.dtype(W.dtype).itemsize
    mm_itemsize = jnp.dtype(matmul_dtype).itemsize
    tc = class_tile or _choose_class_tile(C, F, w_itemsize, class_tile_bytes)
    num_tiles = pl.cdiv(C, tc)
    C_pad = num_tiles * tc
    # Zero-padded rows normalize to exactly-zero logits; they are removed from
    # B_avg with a scalar correction in glue and sliced off at the end.  For C
    # not a multiple of 128, keep a persistently padded / bf16 W outside the
    # training step to avoid paying this XLA pad (a full W read+write) per call.
    W_p = W if C_pad == C else jnp.pad(W, ((0, C_pad - C), (0, 0)))

    # Prologue: normalize the activation rows exactly once, tiled over B.
    tb = _choose_batch_tile(B)
    xn = pl.pallas_call(
        _normalize_rows_kernel,
        grid=(B // tb,),
        in_specs=[pl.BlockSpec((tb, F), lambda b: (b, 0))],
        out_specs=pl.BlockSpec((tb, F), lambda b: (b, 0)),
        out_shape=jax.ShapeDtypeStruct((B, F), matmul_dtype),
        compiler_params=pltpu.CompilerParams(
            dimension_semantics=("parallel",),
            vmem_limit_bytes=_vmem_limit(4 * tb * F * (4 + mm_itemsize))),
    )(x)

    # Per-step VMEM: 2x W tile (double-buffered stream) + f32/matmul_dtype
    # normalization temps + 2x logits-out tile + 2x resident xn (+ labels /
    # B_avg partials).  TODO(synk): for very large B*F also tile the
    # class-streaming kernels over B (xn is kept fully resident here).
    main_est = (2 * tc * F * w_itemsize            # W stream, double-buffered
                + tc * F * (4 + mm_itemsize)       # in-kernel norm temps
                + 2 * B * tc * 4                   # logits tiles
                + 2 * B * F * mm_itemsize          # resident xn (accepted 2x)
                + 2 * B * 4 + 2 * 128 * 4 + _MIB)
    main_params = pltpu.CompilerParams(
        dimension_semantics=("parallel",),
        vmem_limit_bytes=_vmem_limit(main_est))

    if label is None:
        # Logits-only path: skip all B_avg / target work.
        cost = pl.CostEstimate(
            flops=2 * B * C_pad * F + 2 * C_pad * F,
            transcendentals=C_pad,
            bytes_accessed=(C_pad * F * w_itemsize + B * F * mm_itemsize
                            + B * C_pad * 4))
        logits = pl.pallas_call(
            functools.partial(_logits_tile_kernel, matmul_dtype=matmul_dtype),
            grid=(num_tiles,),
            in_specs=[
                pl.BlockSpec((B, F), lambda c: (0, 0)),    # xn (resident)
                pl.BlockSpec((tc, F), lambda c: (c, 0)),   # W tile stream
            ],
            out_specs=pl.BlockSpec((B, tc), lambda c: (0, c)),
            out_shape=jax.ShapeDtypeStruct((B, C_pad), jnp.float32),
            compiler_params=main_params,
            cost_estimate=cost,
        )(xn, W_p)
        logits = logits if C_pad == C else logits[:, :C]
        return logits, jnp.float32(s_init)

    lab2d = label.astype(jnp.int32).reshape(B, 1)
    s2d = jnp.full((1, 1), s_init, dtype=jnp.float32)

    cost = pl.CostEstimate(
        flops=2 * B * C_pad * F + 2 * C_pad * F + 2 * B * C_pad,
        transcendentals=B * C_pad + C_pad,
        bytes_accessed=(C_pad * F * w_itemsize + B * F * mm_itemsize
                        + B * C_pad * 4 + num_tiles * 128 * 4 + B * 4))
    kern = functools.partial(_logits_stats_tile_kernel,
                             matmul_dtype=matmul_dtype, tile_c=tc)
    logits, bavg_part = pl.pallas_call(
        kern,
        grid=(num_tiles,),
        in_specs=[
            pl.BlockSpec(memory_space=pltpu.SMEM),        # s (scalar)
            pl.BlockSpec((B, 1), lambda c: (0, 0)),       # labels (resident)
            pl.BlockSpec((B, F), lambda c: (0, 0)),       # xn (resident)
            pl.BlockSpec((tc, F), lambda c: (c, 0)),      # W tile stream
        ],
        out_specs=[
            pl.BlockSpec((B, tc), lambda c: (0, c)),          # logits tile
            pl.BlockSpec((1, 1, 128), lambda c: (c, 0, 0)),   # B_avg partial
        ],
        out_shape=[
            jax.ShapeDtypeStruct((B, C_pad), jnp.float32),
            jax.ShapeDtypeStruct((num_tiles, 1, 128), jnp.float32),
        ],
        compiler_params=main_params,
        cost_estimate=cost,
    )(s2d, lab2d, xn, W_p)

    # ---- O(B)/O(num_tiles) scalar glue (acos / median / log) ----
    lab = lab2d[:, 0]
    tgt = logits[jnp.arange(B), lab]                      # raw target cosines
    exp_sum = jnp.sum(bavg_part[:, 0, 0])                 # targets already excluded
    if C_pad != C:
        # Each padded class contributed exp(0) = 1.0 exactly, B times.
        exp_sum = exp_sum - jnp.float32((C_pad - C) * B)
    b_avg = exp_sum / B
    theta_tgt = jnp.arccos(jnp.clip(tgt, -1.0 + 1e-07, 1.0 - 1e-07))
    theta_med = jnp.sort(theta_tgt)[(B - 1) // 2]         # torch lower-median
    s_new = jnp.log(b_avg) / jnp.cos(
        jnp.minimum(jnp.float32(math.pi / 4), theta_med))

    # Final elementwise scale: large lane-dense blocks (independent of the
    # matmul tile) aliased onto the logits buffer (no second allocation).
    ts = _choose_scale_tile(B, C_pad, tc)
    out = pl.pallas_call(
        _scale_tile_kernel,
        grid=(C_pad // ts,),
        in_specs=[
            pl.BlockSpec(memory_space=pltpu.SMEM),        # s_new (scalar)
            pl.BlockSpec((B, ts), lambda c: (0, c)),      # logits block
        ],
        out_specs=pl.BlockSpec((B, ts), lambda c: (0, c)),
        out_shape=jax.ShapeDtypeStruct((B, C_pad), jnp.float32),
        input_output_aliases={1: 0},
        compiler_params=pltpu.CompilerParams(
            dimension_semantics=("parallel",),
            vmem_limit_bytes=_vmem_limit(4 * B * ts * 4 + _MIB)),
    )(s_new.reshape(1, 1).astype(jnp.float32), logits)
    out = out if C_pad == C else out[:, :C]
    return out, s_new


# ----------------------------- demo / check ----------------------------------


def _ref_forward(x, W, s_init, label):
    xn = x / jnp.maximum(jnp.linalg.norm(x, axis=1, keepdims=True), 1e-12)
    wn = W / jnp.maximum(jnp.linalg.norm(W, axis=1, keepdims=True), 1e-12)
    logits = xn @ wn.T
    if label is None:
        return logits, jnp.float32(s_init)
    theta = jnp.arccos(jnp.clip(logits, -1.0 + 1e-07, 1.0 - 1e-07))
    one_hot = jax.nn.one_hot(label, W.shape[0])
    B_avg = jnp.sum(jnp.where(one_hot < 1, jnp.exp(s_init * logits), 0.0)) / x.shape[0]
    theta_t = theta[jnp.arange(x.shape[0]), label]
    theta_med = jnp.sort(theta_t)[(x.shape[0] - 1) // 2]
    s_new = jnp.log(B_avg) / jnp.cos(jnp.minimum(jnp.float32(math.pi / 4), theta_med))
    return s_new * logits, s_new


if __name__ == "__main__":
    B, num_features, num_classes = 8, 32, 16

    key = jax.random.PRNGKey(0)
    kx, kw, kl = jax.random.split(key, 3)

    x = jax.random.normal(kx, (B, num_features), dtype=jnp.float32)
    # xavier_uniform_ on W of shape (num_classes, num_features):
    bound = math.sqrt(6.0 / (num_classes + num_features))
    W = jax.random.uniform(kw, (num_classes, num_features), jnp.float32,
                           -bound, bound)
    label = jax.random.randint(kl, (B,), 0, num_classes)
    s_init = math.sqrt(2.0) * math.log(num_classes - 1)

    # f32 matmul path (matches the f32 reference tightly).
    out, s_new = adacos_forward(x, W, s_init, label=label,
                                matmul_dtype=jnp.float32)
    logits_only, _ = adacos_forward(x, W, s_init, label=None,
                                    matmul_dtype=jnp.float32)
    # Production config: bf16 W stream + bf16 MXU operands, f32 accumulation.
    out_bf16, s_bf16 = adacos_forward(x, W.astype(jnp.bfloat16), s_init,
                                      label=label)
    jax.block_until_ready((out, s_new, logits_only, out_bf16, s_bf16))

    ref_out, ref_s = _ref_forward(x, W, s_init, label)
    ref_logits, _ = _ref_forward(x, W, s_init, None)

    assert jnp.allclose(logits_only, ref_logits, atol=3e-5, rtol=3e-5)
    assert jnp.allclose(s_new, ref_s, atol=1e-3, rtol=1e-3)
    assert jnp.allclose(out, ref_out, atol=1e-3, rtol=1e-3)
    # bf16 W + bf16 matmul perturbs cosines slightly -> looser tolerance.
    assert jnp.allclose(s_bf16, ref_s, atol=0.2, rtol=0.05)
    assert jnp.allclose(out_bf16, ref_out, atol=0.3, rtol=0.1)
    assert bool(jnp.all(jnp.isfinite(out_bf16)))

    # Multi-tile + padding path (2 class tiles, C not a multiple of 128):
    # exercises the tile offsets in the target mask and the padding correction.
    B2, F2, C2 = 16, 64, 300
    k2 = jax.random.split(jax.random.PRNGKey(1), 3)
    x2 = jax.random.normal(k2[0], (B2, F2), dtype=jnp.float32)
    b2 = math.sqrt(6.0 / (C2 + F2))
    W2 = jax.random.uniform(k2[1], (C2, F2), jnp.float32, -b2, b2)
    l2 = jax.random.randint(k2[2], (B2,), 0, C2)
    s2_init = math.sqrt(2.0) * math.log(C2 - 1)
    out2, s2 = adacos_forward(x2, W2, s2_init, label=l2,
                              matmul_dtype=jnp.float32)
    jax.block_until_ready((out2, s2))
    ref_out2, ref_s2 = _ref_forward(x2, W2, s2_init, l2)
    assert jnp.allclose(s2, ref_s2, atol=2e-3, rtol=2e-3)
    assert jnp.allclose(out2, ref_out2, atol=2e-3, rtol=2e-3)

    print("KERNEL_OK")
</pallas_src>

<mosaic_0001>
module attributes {stable_mosaic.version = 11 : i64} {
  func.func @_normalize_rows_kernel(%arg0: i32, %arg1: memref<8x32xf32, #tpu.memory_space<vmem>>, %arg2: memref<8x32xf32, #tpu.memory_space<vmem>>) attributes {dimension_semantics = [#tpu.dimension_semantics<parallel>], iteration_bounds = array<i64: 1>, scalar_prefetch = 0 : i64, scratch_operands = 0 : i64, tpu.core_type = #tpu.core_type<tc>, window_params = [{transform_indices = @transform_0, window_bounds = array<i64: 8, 32>}, {transform_indices = @transform_1, window_bounds = array<i64: 8, 32>}]} {
    %c0 = arith.constant 0 : index
    %c0_0 = arith.constant 0 : index
    %0 = vector.load %arg1[%c0, %c0_0] : memref<8x32xf32, #tpu.memory_space<vmem>>, vector<8x32xf32>
    %1 = arith.mulf %0, %0 : vector<8x32xf32>
    %cst = arith.constant dense<0.000000e+00> : vector<8xf32>
    %2 = vector.multi_reduction <add>, %1, %cst [1] : vector<8x32xf32> to vector<8xf32>
    %3 = vector.shape_cast %2 : vector<8xf32> to vector<8x1xf32>
    %cst_1 = arith.constant 1.000000e-24 : f32
    %4 = vector.broadcast %cst_1 : f32 to vector<8x1xf32>
    %5 = arith.maximumf %3, %4 : vector<8x1xf32>
    %6 = math.rsqrt %5 : vector<8x1xf32>
    %7 = vector.broadcast %6 : vector<8x1xf32> to vector<8x32xf32>
    %8 = arith.mulf %0, %7 : vector<8x32xf32>
    %c0_2 = arith.constant 0 : index
    %c0_3 = arith.constant 0 : index
    %9 = vector.load %arg2[%c0_2, %c0_3] : memref<8x32xf32, #tpu.memory_space<vmem>>, vector<8x32xf32>
    tpu.vector_store %arg2[%c0_2, %c0_3], %8 {strides = array<i32>} : memref<8x32xf32, #tpu.memory_space<vmem>>, vector<8x32xf32>,
    return
  }
  func.func @transform_0(%arg0: i32) -> (i32, i32) {
    %c0_i32 = arith.constant 0 : i32
    %c0_i32_0 = arith.constant 0 : i32
    return %arg0, %c0_i32 : i32, i32
  }
  func.func @transform_1(%arg0: i32) -> (i32, i32) {
    %c0_i32 = arith.constant 0 : i32
    %c0_i32_0 = arith.constant 0 : i32
    return %arg0, %c0_i32 : i32, i32
  }
}

</mosaic_0001>

<llo_original>
// kernel: tpu_custom_call.1
$region0: #{tpu_custom_call.1}
  #allocation0 [shape = 'u32[]', space=smem, size = 0x4, offset = 0x4, fixed_abs, tag = 'smem constant byte address 0x4 - core index']
  #allocation1 [shape = 'u32[144,128]{1,0:T(1,128)}', space=vmem, size = 0x12000, scoped, tag = 'internal scratch']
  %s0 = inlined_call_operand.hbm [shape: f32[8,32], index: 0, kind: input, shape index: {}]
  %s1 = inlined_call_operand.hbm [shape: f32[8,32], index: 1, kind: output, shape index: {}]
  %s2 = sld [smem:[#allocation0]]
  $region18: #{tpu_custom_call.1} parent=0
    _
  %s4 = ssub.s32 1, %s2
  %s5 = scalar_select 0, %s4, %s2
  $region1: #{tpu_custom_call.1} parent=0
    #allocation2 [shape = 'u8[4096]{0}', space=vmem, size = 0x1000, scoped, tag = 'input window, operand 0, single buffered']
    #allocation3 [shape = 's32[1]{0}', space=sflag, size = 0x4, scoped, tag = 'scoped memory for tpu_custom_call.1']
    #allocation4 [shape = 's32[1]{0}', space=sflag, size = 0x4, scoped, tag = 'scoped memory for tpu_custom_call.1']
    #allocation5 [shape = 'u8[4096]{0}', space=vmem, size = 0x1000, scoped, tag = 'output window, operand 0, single buffered']
    %6 = vsyncpa [#allocation3], 0
    %7 = vsyncpa [#allocation4], 0
    // Predicated region
    $region2: #{tpu_custom_call.1} parent=1 // pred_check
      _
    $region3: #{tpu_custom_call.1} parent=1 // pred_check_branch
      %9 = sbr.rel (0) target = $region5
    $region4: #{tpu_custom_call.1} parent=1 // pred_region
      %s11 = ssub.s32 128, 128
      %12 = vsyncadd [#allocation3], %s11
      %s14 = sshll.u32 [#allocation2], 4
      %s15 = int_to_ptr.vmem [resolvable:$true] %s14
      %17 = dma.hbm_to_vmem [thread:$0]  %s0, 128, %s15, [#allocation3]
    $region5: #{tpu_custom_call.1} parent=1 // pred_fallthru
      _
    // Predicated region
    $region6: #{tpu_custom_call.1} parent=1 // pred_check
      _
    $region7: #{tpu_custom_call.1} parent=1 // pred_check_branch
      %19 = sbr.rel (0) target = $region9
    $region8: #{tpu_custom_call.1} parent=1 // pred_region
      %20 = dma.done [#allocation3], 128
    $region9: #{tpu_custom_call.1} parent=1 // pred_fallthru
      _
    %v21 = vld [vmem:[#allocation2] sm:$0xff]
    %v22 = vmul.f32 %v21, %v21
    %vm23 = vcmask 261120
    %v24 = vsel %vm23, %v22, 0.0
    %25 = vadd.xlane.f32.xlu0 %v24
    %v26 = vpop.xlane.xlu0 %25
    %v27 = vmax.f32 %v26, 1e-24
    %v28 = vrsqrt.pop %v27
    %v29 = vmul.f32 %v21, %v28
    %30 = vst.msk [vmem:[#allocation5] sm:$0xff] %vm23, %v29
    // Predicated region
    $region10: #{tpu_custom_call.1} parent=1 // pred_check
      _
    $region11: #{tpu_custom_call.1} parent=1 // pred_check_branch
      %32 = sbr.rel (0) target = $region13
    $region12: #{tpu_custom_call.1} parent=1 // pred_region
      %s34 = ssub.s32 128, 128
      %35 = vsyncadd [#allocation4], %s34
      %s37 = sshll.u32 [#allocation5], 4
      %s38 = int_to_ptr.vmem [resolvable:$true] %s37
      %40 = dma.vmem_to_hbm [thread:$0]  %s38, 128, %s1, [#allocation4]
    $region13: #{tpu_custom_call.1} parent=1 // pred_fallthru
      _
    // Predicated region
    $region14: #{tpu_custom_call.1} parent=1 // pred_check
      _
    $region15: #{tpu_custom_call.1} parent=1 // pred_check_branch
      %42 = sbr.rel (0) target = $region17
    $region16: #{tpu_custom_call.1} parent=1 // pred_region
      %43 = dma.done [#allocation4], 128
    $region17: #{tpu_custom_call.1} parent=1 // pred_fallthru
      _
    %44 = vsyncpa [#allocation3], 1
    %45 = vsyncpa [#allocation4], 1

</llo_original>
